<compile_context>
chip_gen: v7x
topology: tpu7x:2x2x1
jax: 0.10.0
libtpu: 0.0.40
codegen_flags: <defaults>
</compile_context>

<pallas_src>
import functools
import math

import jax
import jax.numpy as jnp
from jax.experimental import pallas as pl
from jax.experimental.pallas import tpu as pltpu


def _round_up(x: int, m: int) -> int:
    return ((x + m - 1) // m) * m


def _cond_linear_kernel(block_task_ref, x_ref, w_ref, o_ref):
    # block_task_ref: SMEM (num_blocks,) int32 scalar-prefetch (consumed by index_maps)
    # x_ref: VMEM (TM, FIN_P) bf16        — one padded row-block (single task)
    # w_ref: VMEM (1, FIN_P, TN) bf16     — that task's weight tile (x @ W layout)
    # o_ref: VMEM (TM, TN) f32
    del block_task_ref
    o_ref[...] = jnp.dot(
        x_ref[...], w_ref[0], preferred_element_type=jnp.float32
    ).astype(o_ref.dtype)


def conditional_linear(x, task_id, weight_table, *, block_rows=128,
                       compute_dtype=jnp.bfloat16):
    """y[b] = x[b] @ weight_table[task_id[b]]  (== W_{task_id[b]} @ x[b] in PyTorch).

    x:            (B, fin) float32
    task_id:      (B,) int32
    weight_table: (n_tasks, fin, fout) float32  (PyTorch (fout, fin) stored transposed)
    """
    B, fin = x.shape
    n_tasks, fin_w, fout = weight_table.shape
    assert fin == fin_w

    # Row tile: multiple of 8, capped by the batch so tiny batches don't pay
    # worst-case per-task padding.
    TM = max(8, min(int(block_rows), _round_up(B, 8)))
    FIN_P = _round_up(fin, 128)
    FOUT_P = _round_up(fout, 128)
    # fout tile: largest multiple of 128 (<= 512) that divides FOUT_P.
    TN = max(d for d in (512, 384, 256, 128) if FOUT_P % d == 0)
    n_tiles = FOUT_P // TN
    # TODO(synk): very large fin (FIN_P * (TM + TN) bf16 approaching VMEM) would need a
    # K-tiled accumulator grid axis; typical ConditionalLinear layers fit comfortably.

    # ---- group rows by task (static worst-case padded layout, jit-friendly) ----
    order = jnp.argsort(task_id)                                  # rows sorted by task
    tid_sorted = task_id[order].astype(jnp.int32)

    counts = jnp.bincount(task_id, length=n_tasks).astype(jnp.int32)     # (n_tasks,)
    padded_counts = ((counts + TM - 1) // TM) * TM
    grp_start = jnp.cumsum(counts) - counts                              # exclusive
    grp_start_pad = jnp.cumsum(padded_counts) - padded_counts            # exclusive
    grp_end_pad = jnp.cumsum(padded_counts)                              # inclusive

    # Destination row in the padded task-grouped buffer, expressed per ORIGINAL row
    # (one small int32 scatter; no feature-sized gather/scatter round-trip).
    rank_sorted = jnp.arange(B, dtype=jnp.int32) - grp_start[tid_sorted]
    dest_sorted = grp_start_pad[tid_sorted] + rank_sorted
    dest = jnp.zeros((B,), jnp.int32).at[order].set(dest_sorted)         # (B,)

    total_padded = _round_up(B + n_tasks * (TM - 1), TM)   # static worst case
    num_blocks = total_padded // TM

    # Scatter rows into the padded buffer (zeros elsewhere), lane-padded to FIN_P.
    x_cast = jnp.pad(x.astype(compute_dtype), ((0, 0), (0, FIN_P - fin)))
    x_pad = jnp.zeros((total_padded, FIN_P), compute_dtype).at[dest].set(x_cast)

    # Task owning each TM-row block (group boundaries are TM-aligned by construction).
    # Blocks past the used region clamp to the last task; their rows are all-zero and
    # their outputs are never gathered, so the value is irrelevant.
    block_starts = jnp.arange(num_blocks, dtype=jnp.int32) * TM
    block_task = jnp.searchsorted(grp_end_pad, block_starts, side="right")
    block_task = jnp.minimum(block_task, n_tasks - 1).astype(jnp.int32)

    w_pad = jnp.pad(weight_table.astype(compute_dtype),
                    ((0, 0), (0, FIN_P - fin), (0, FOUT_P - fout)))

    grid_spec = pltpu.PrefetchScalarGridSpec(
        num_scalar_prefetch=1,                 # block_task -> SMEM, fed to index_maps
        grid=(num_blocks, n_tiles),
        in_specs=[
            pl.BlockSpec((TM, FIN_P), lambda b, n, bt: (b, 0)),            # row block b
            pl.BlockSpec((1, FIN_P, TN), lambda b, n, bt: (bt[b], 0, n)),  # task weight
        ],
        out_specs=pl.BlockSpec((TM, TN), lambda b, n, bt: (b, n)),
    )

    y_pad = pl.pallas_call(
        _cond_linear_kernel,
        out_shape=jax.ShapeDtypeStruct((total_padded, FOUT_P), jnp.float32),
        grid_spec=grid_spec,
        compiler_params=pltpu.CompilerParams(
            # disjoint output blocks on both axes -> megacore-shardable on v7x
            dimension_semantics=("parallel", "parallel"),
        ),
    )(block_task, x_pad, w_pad)

    # Gather each original row's result, drop lane padding.
    y = y_pad[dest, :fout]
    return y.astype(x.dtype)


def make_weight_table(key, n_tasks, fin, fout):
    """kaiming_normal_(mode='fan_out', nonlinearity='relu') per task.

    For a (fout, fin) matrix: fan_out = fout, gain = sqrt(2) => std = sqrt(2 / fout).
    Returns (n_tasks, fout, fin) PyTorch layout and (n_tasks, fin, fout) kernel layout.
    """
    std = math.sqrt(2.0 / fout)
    w_torch_layout = jax.random.normal(key, (n_tasks, fout, fin), jnp.float32) * std
    w_kernel_layout = jnp.transpose(w_torch_layout, (0, 2, 1))
    return w_torch_layout, w_kernel_layout


if __name__ == "__main__":
    B, fin, fout, n_tasks = 8, 32, 64, 4

    key = jax.random.PRNGKey(0)
    k_w, k_x, k_t = jax.random.split(key, 3)

    W_torch, W_kernel = make_weight_table(k_w, n_tasks, fin, fout)
    x = jax.random.normal(k_x, (B, fin), jnp.float32)
    task_id = jax.random.randint(k_t, (B,), 0, n_tasks, dtype=jnp.int32)

    fwd = jax.jit(functools.partial(conditional_linear, block_rows=128))
    y = jax.block_until_ready(fwd(x, task_id, W_kernel))
    assert y.shape == (B, fout)

    # Reference matched to the kernel's bf16-input / f32-accumulate numerics.
    W_bf = W_torch.astype(jnp.bfloat16).astype(jnp.float32)
    x_bf = x.astype(jnp.bfloat16).astype(jnp.float32)
    y_ref_bf16 = jnp.einsum("bof,bf->bo", W_bf[task_id], x_bf, precision="highest")
    assert jnp.allclose(y, y_ref_bf16, atol=2e-3, rtol=2e-3), "mismatch vs bf16 reference"

    # Loose sanity check against the exact fp32 PyTorch forward (bmm).
    y_ref_f32 = jnp.einsum("bof,bf->bo", W_torch[task_id], x, precision="highest")
    assert jnp.allclose(y, y_ref_f32, atol=1e-1, rtol=1e-1), "mismatch vs fp32 reference"

    # TODO(synk): ConditionalBatchNorm1d path (use_bn=True) not implemented; the default
    # constructor disables it, so the forward here is exactly the per-task bmm.
    print("KERNEL_OK")
</pallas_src>

<mosaic_0001>
module attributes {stable_mosaic.version = 11 : i64} {
  func.func @_cond_linear_kernel(%arg0: i32, %arg1: i32, %arg2: memref<5xi32, #tpu.memory_space<smem>>, %arg3: memref<8x128xbf16, #tpu.memory_space<vmem>>, %arg4: memref<1x128x128xbf16, #tpu.memory_space<vmem>>, %arg5: memref<8x128xf32, #tpu.memory_space<vmem>>) attributes {dimension_semantics = [#tpu.dimension_semantics<parallel>, #tpu.dimension_semantics<parallel>], iteration_bounds = array<i64: 5, 1>, scalar_prefetch = 1 : i64, scratch_operands = 0 : i64, tpu.core_type = #tpu.core_type<tc>, window_params = [{transform_indices = @transform_0, window_bounds = array<i64: 8, 128>}, {transform_indices = @transform_1, window_bounds = array<i64: 1, 128, 128>}, {transform_indices = @transform_2, window_bounds = array<i64: 8, 128>}]} {
    %c0 = arith.constant 0 : index
    %c0_0 = arith.constant 0 : index
    %0 = vector.load %arg3[%c0, %c0_0] : memref<8x128xbf16, #tpu.memory_space<vmem>>, vector<8x128xbf16>
    %c0_1 = arith.constant 0 : index
    %c0_2 = arith.constant 0 : index
    %c0_3 = arith.constant 0 : index
    %1 = vector.load %arg4[%c0_1, %c0_2, %c0_3] : memref<1x128x128xbf16, #tpu.memory_space<vmem>>, vector<1x128x128xbf16>
    %2 = vector.shape_cast %1 : vector<1x128x128xbf16> to vector<128x128xbf16>
    %cst = arith.constant dense<0.000000e+00> : vector<8x128xf32>
    %3 = tpu.matmul %0, %2, %cst {dimension_numbers = #tpu.dot_dimension_numbers<[1], [0], [0], [1], [0, 0, 1, 1], [], []>} : vector<8x128xbf16>, vector<128x128xbf16>, vector<8x128xf32> -> vector<8x128xf32>
    %c0_4 = arith.constant 0 : index
    %c0_5 = arith.constant 0 : index
    %4 = vector.load %arg5[%c0_4, %c0_5] : memref<8x128xf32, #tpu.memory_space<vmem>>, vector<8x128xf32>
    tpu.vector_store %arg5[%c0_4, %c0_5], %3 {strides = array<i32>} : memref<8x128xf32, #tpu.memory_space<vmem>>, vector<8x128xf32>,
    return
  }
  func.func @transform_0(%arg0: i32, %arg1: i32, %arg2: memref<5xi32, #tpu.memory_space<smem>>) -> (i32, i32) {
    %c0_i32 = arith.constant 0 : i32
    %c0_i32_0 = arith.constant 0 : i32
    return %arg0, %c0_i32 : i32, i32
  }
  func.func @transform_1(%arg0: i32, %arg1: i32, %arg2: memref<5xi32, #tpu.memory_space<smem>>) -> (i32, i32, i32) {
    %0 = arith.index_cast %arg0 : i32 to index
    %1 = memref.load %arg2[%0] : memref<5xi32, #tpu.memory_space<smem>>
    %c0_i32 = arith.constant 0 : i32
    %c0_i32_0 = arith.constant 0 : i32
    return %1, %c0_i32, %arg1 : i32, i32, i32
  }
  func.func @transform_2(%arg0: i32, %arg1: i32, %arg2: memref<5xi32, #tpu.memory_space<smem>>) -> (i32, i32) {
    %c0_i32 = arith.constant 0 : i32
    return %arg0, %arg1 : i32, i32
  }
}

</mosaic_0001>

<llo_original>
// kernel: custom-call
$region0: #{custom-call}
  %s0 = inlined_call_operand.vmem [shape: u32[5], index: 0, kind: output, shape index: {}]

// kernel: custom-call.10
$region0: #{custom-call.10}
  %s0 = inlined_call_operand.hbm [shape: f32[8,64], index: 0, kind: output, shape index: {}]

// kernel: conditional_linear.1
$region0: #{conditional_linear.1}
  #allocation0 [shape = 'u32[]', space=smem, size = 0x4, offset = 0x4, fixed_abs, tag = 'smem constant byte address 0x4 - core index']
  #allocation1 [shape = 'u32[144,128]{1,0:T(1,128)}', space=vmem, size = 0x12000, scoped, tag = 'internal scratch']
  #allocation2 [shape = 's32[1]{0}', space=sflag, size = 0x4, scoped, tag = 'scoped memory for conditional_linear.1']
  #allocation3 [shape = 'u8[512]{0}', space=smem, size = 0x200, scoped, tag = 'prefetched SMEM operand 0']
  %s0 = inlined_call_operand.vmem [shape: s32[5], index: 0, kind: input, shape index: {}]
  %s1 = inlined_call_operand.vmem [shape: bf16[40,128], index: 1, kind: input, shape index: {}]
  %s2 = inlined_call_operand.vmem [shape: bf16[4,128,128], index: 2, kind: input, shape index: {}]
  %s3 = inlined_call_operand.vmem [shape: f32[40,128], index: 3, kind: output, shape index: {}]
  %s4 = sld [smem:[#allocation0]]
  $region41: #{conditional_linear.1} parent=0
    _
  %s6 = ssub.s32 1, %s4
  %s7 = scalar_select 0, %s6, %s4
  %s8 = sshll.u32 %s0, 4
  %s9 = int_to_ptr.vmem [resolvable:$true] %s8
  %11 = dma.vmem_to_smem %s9, 16, [#allocation3], [#allocation2]
  %12 = dma.done [#allocation2], 16
  %13 = sfence
  loop: start=0, step=1, limit=7
  $region2: #{conditional_linear.1} parent=0 // loop_pre_header
    _
  $region3: #{conditional_linear.1} parent=0 // loop_header
    %s15 = sphi 0, %s19
    %p16 = scmp.ge.s32.totalorder %s15, 7
    %s22 = sphi 0, %s34
    %s23 = sphi 0, %s30
    %s24 = sphi 0, %s22
    %s25 = sphi 0, %s23
    %s26 = sphi 0, %s24
    %s27 = sphi 0, %s25
    %s37 = sphi 0, %s39
    %s40 = sphi 0, %s37
    %s41 = sphi 0, %s40
    %s57 = sphi 0, %s41
    %s67 = sphi 0, %s69
    %s70 = sphi 0, %s67
    %s71 = sphi 0, %s70
    %s87 = sphi 0, %s71
    %s95 = sphi 0, %s97
    %s98 = sphi 0, %s95
    %s99 = sphi 0, %s98
    %s115 = sphi 0, %s99
  $region4: #{conditional_linear.1} parent=0 // loop_header_branch
    %18 = sbr.rel (%p16) target = $region8
  $region5: #{conditional_linear.1} parent=0 // loop_body
    %s20 = ssub.s32 %s15, 1
    %s21 = ssub.s32 %s15, 2
    %s28 = sadd.s32 1, %s23
    %p29 = scmp.ge.s32.totalorder %s28, 1
    %s30 = scalar_select %p29, 0, %s28
    %s31 = sadd.s32 1, %s22
    %s32 = scalar_select %p29, %s31, %s22
    %p33 = scmp.ge.s32.totalorder %s32, 5
    %s34 = scalar_select %p33, 0, %s32
    %s35 = ssub.s32 %s22, %s34
    %p36 = scmp.eq.s32.totalorder %s35, 0
    %s38 = sadd.s32 %s37, 1
    %s39 = scalar_select %p36, %s37, %s38
    %p42 = pneg %p36
    %p43 = scmp.eq.s32.totalorder %s15, 4
    %p44 = por %p42, %p43
    %p45 = scmp.ne.s32.totalorder %s37, %s40
    %p46 = scmp.eq.s32.totalorder %s15, 0
    %p47 = por %p45, %p46
    %p48 = scmp.ne.s32.totalorder %s37, %s40
    %p49 = scmp.eq.s32.totalorder %s20, 4
    %p50 = por %p48, %p49
    %p51 = scmp.ne.s32.totalorder %s40, %s41
    %p52 = scmp.eq.s32.totalorder %s20, 0
    %p53 = por %p51, %p52
    %p54 = scmp.ne.s32.totalorder %s40, %s41
    %p55 = scmp.eq.s32.totalorder %s21, 4
    %p56 = por %p54, %p55
    %p58 = scmp.ne.s32.totalorder %s41, %s57
    %p59 = scmp.eq.s32.totalorder %s21, 0
    %p60 = por %p58, %p59
    %s61 = sld [smem:[#allocation3 + %s22]]
    %s62 = sld [smem:[#allocation3 + %s34]]
    %s63 = ssub.s32 %s61, %s62
    %s64 = ssub.s32 %s23, %s30
    %s65 = sor.u32 %s63, %s64
    %p66 = scmp.eq.s32.totalorder %s65, 0
    %s68 = sadd.s32 %s67, 1
    %s69 = scalar_select %p66, %s67, %s68
    %p72 = pneg %p66
    %p73 = scmp.eq.s32.totalorder %s15, 4
    %p74 = por %p72, %p73
    %p75 = scmp.ne.s32.totalorder %s67, %s70
    %p76 = scmp.eq.s32.totalorder %s15, 0
    %p77 = por %p75, %p76
    %p78 = scmp.ne.s32.totalorder %s67, %s70
    %p79 = scmp.eq.s32.totalorder %s20, 4
    %p80 = por %p78, %p79
    %p81 = scmp.ne.s32.totalorder %s70, %s71
    %p82 = scmp.eq.s32.totalorder %s20, 0
    %p83 = por %p81, %p82
    %p84 = scmp.ne.s32.totalorder %s70, %s71
    %p85 = scmp.eq.s32.totalorder %s21, 4
    %p86 = por %p84, %p85
    %p88 = scmp.ne.s32.totalorder %s71, %s87
    %p89 = scmp.eq.s32.totalorder %s21, 0
    %p90 = por %p88, %p89
    %s91 = ssub.s32 %s22, %s34
    %s92 = ssub.s32 %s23, %s30
    %s93 = sor.u32 %s91, %s92
    %p94 = scmp.eq.s32.totalorder %s93, 0
    %s96 = sadd.s32 %s95, 1
    %s97 = scalar_select %p94, %s95, %s96
    %p100 = pneg %p94
    %p101 = scmp.eq.s32.totalorder %s15, 4
    %p102 = por %p100, %p101
    %p103 = scmp.ne.s32.totalorder %s95, %s98
    %p104 = scmp.eq.s32.totalorder %s15, 0
    %p105 = por %p103, %p104
    %p106 = scmp.ne.s32.totalorder %s95, %s98
    %p107 = scmp.eq.s32.totalorder %s20, 4
    %p108 = por %p106, %p107
    %p109 = scmp.ne.s32.totalorder %s98, %s99
    %p110 = scmp.eq.s32.totalorder %s20, 0
    %p111 = por %p109, %p110
    %p112 = scmp.ne.s32.totalorder %s98, %s99
    %p113 = scmp.eq.s32.totalorder %s21, 4
    %p114 = por %p112, %p113
    %p116 = scmp.ne.s32.totalorder %s99, %s115
    %p117 = scmp.eq.s32.totalorder %s21, 0
    %p118 = por %p116, %p117
    %p119 = scmp.le.s32.totalorder 1, %s15
    %p120 = scmp.lt.s32.totalorder %s15, 6
    %p121 = pnand %p119, %p120
    %p122 = pneg %p121
    // Predicated region
    $region9: #{conditional_linear.1} parent=5 // pred_check
      _
    $region10: #{conditional_linear.1} parent=5 // pred_check_branch
      %124 = sbr.rel (%p121) target = $region12
    $region11: #{conditional_linear.1} parent=5 // pred_region
      %s125 = ssub.s32 %s15, 1
    $region12: #{conditional_linear.1} parent=5 // pred_fallthru
      _
    %p126 = scmp.lt.s32.totalorder %s15, 5
    // Predicated region
    $region13: #{conditional_linear.1} parent=5 // pred_check
      %p127 = pneg %p126
    $region14: #{conditional_linear.1} parent=5 // pred_check_branch
      %129 = sbr.rel (%p127) target = $region16
    $region15: #{conditional_linear.1} parent=5 // pred_region
      // Predicated region
      $region17: #{conditional_linear.1} parent=15 // pred_check
        %p130 = pneg %p47
      $region18: #{conditional_linear.1} parent=15 // pred_check_branch
        %132 = sbr.rel (%p130) target = $region20
      $region19: #{conditional_linear.1} parent=15 // pred_region
        %p133 = scmp.lt.s32.totalorder %s22, 4
        %s134 = scalar_select %p133, %s22, 4
        %s135 = smul.addr %s134, 4
        %s136 = scalar_lea.vmem %s1, %s135
      $region20: #{conditional_linear.1} parent=15 // pred_fallthru
        _
      // Predicated region
      $region21: #{conditional_linear.1} parent=15 // pred_check
        %p137 = pneg %p77
      $region22: #{conditional_linear.1} parent=15 // pred_check_branch
        %139 = sbr.rel (%p137) target = $region24
      $region23: #{conditional_linear.1} parent=15 // pred_region
        %s140 = sld [smem:[#allocation3 + %s22]]
        %p141 = scmp.lt.s32.totalorder %s140, 3
        %s142 = scalar_select %p141, %s140, 3
        %p143 = scmp.lt.s32.totalorder %s23, 0
        %s144 = scalar_select %p143, %s23, 0
        %s145 = smul.addr %s142, 16
        %s146 = sadd.s32 %s144, %s145
        %s147 = smul.addr %s146, 4
        %s148 = scalar_lea.vmem %s2, %s147
        %s149 = sld [smem:[#allocation3 + %s22]]
      $region24: #{conditional_linear.1} parent=15 // pred_fallthru
        _
    $region16: #{conditional_linear.1} parent=5 // pred_fallthru
      _
    %p150 = scmp.le.s32.totalorder 1, %s15
    %p151 = scmp.lt.s32.totalorder %s15, 6
    %p152 = pnand %p150, %p151
    %p153 = pneg %p152
    // Predicated region
    $region25: #{conditional_linear.1} parent=5 // pred_check
      _
    $region26: #{conditional_linear.1} parent=5 // pred_check_branch
      %155 = sbr.rel (%p152) target = $region28
    $region27: #{conditional_linear.1} parent=5 // pred_region
      %s156 = ssub.s32 %s15, 1
      %p157 = scmp.lt.s32.totalorder %s24, 4
      %s158 = scalar_select %p157, %s24, 4
      %s159 = smul.addr %s158, 4
      %s160 = scalar_lea.vmem %s1, %s159
      %p161 = pneg %p53
      %p162 = pneg %p50
      %s163 = sld [smem:[#allocation3 + %s24]]
      %p164 = scmp.lt.s32.totalorder %s163, 3
      %s165 = scalar_select %p164, %s163, 3
      %p166 = scmp.lt.s32.totalorder %s25, 0
      %s167 = scalar_select %p166, %s25, 0
      %s168 = smul.addr %s165, 16
      %s169 = sadd.s32 %s167, %s168
      %s170 = smul.addr %s169, 4
      %s171 = scalar_lea.vmem %s2, %s170
      %p172 = pneg %p83
      %p173 = pneg %p80
      %p174 = pneg %p111
      %p175 = pneg %p108
      %p176 = scmp.lt.s32.totalorder %s24, 4
      %s177 = scalar_select %p176, %s24, 4
      %p178 = scmp.lt.s32.totalorder %s25, 0
      %s179 = scalar_select %p178, %s25, 0
      %s180 = sadd.s32 %s179, %s177
      %s181 = smul.addr %s180, 8
      %s182 = scalar_lea.vmem %s3, %s181
      %p183 = scmp.lt.s32.totalorder %s24, 4
      %s184 = scalar_select %p183, %s24, 4
      %s185 = smul.addr %s184, 4
      %s186 = scalar_lea.vmem %s1, %s185
      %s187 = sld [smem:[#allocation3 + %s24]]
      %p188 = scmp.lt.s32.totalorder %s187, 3
      %s189 = scalar_select %p188, %s187, 3
      %p190 = scmp.lt.s32.totalorder %s25, 0
      %s191 = scalar_select %p190, %s25, 0
      %s192 = smul.addr %s189, 16
      %s193 = sadd.s32 %s191, %s192
      %s194 = smul.addr %s193, 4
      %s195 = scalar_lea.vmem %s2, %s194
      %s196 = sld [smem:[#allocation3 + %s24]]
      %p197 = scmp.lt.s32.totalorder %s24, 4
      %s198 = scalar_select %p197, %s24, 4
      %p199 = scmp.lt.s32.totalorder %s25, 0
      %s200 = scalar_select %p199, %s25, 0
      %s201 = sadd.s32 %s200, %s198
      %s202 = smul.addr %s201, 8
      %s203 = scalar_lea.vmem %s3, %s202
      %v205 = vld [vmem:[%s186] sm:$0xf]
      %v206 = vld [vmem:[%s195] sm:$0xf]
      %v207 = vld [vmem:[%s195 + $0x4] sm:$0xf]
      %v208 = vld [vmem:[%s195 + $0x8] sm:$0xf]
      %v209 = vld [vmem:[%s195 + $0xc] sm:$0xf]
      %v210 = vld [vmem:[%s195 + $0x10] sm:$0xf]
      %v211 = vld [vmem:[%s195 + $0x14] sm:$0xf]
      %v212 = vld [vmem:[%s195 + $0x18] sm:$0xf]
      %v213 = vld [vmem:[%s195 + $0x1c] sm:$0xf]
      %v214 = vld [vmem:[%s195 + $0x20] sm:$0xf]
      %v215 = vld [vmem:[%s195 + $0x24] sm:$0xf]
      %v216 = vld [vmem:[%s195 + $0x28] sm:$0xf]
      %v217 = vld [vmem:[%s195 + $0x2c] sm:$0xf]
      %v218 = vld [vmem:[%s195 + $0x30] sm:$0xf]
      %v219 = vld [vmem:[%s195 + $0x34] sm:$0xf]
      %v220 = vld [vmem:[%s195 + $0x38] sm:$0xf]
      %v221 = vld [vmem:[%s195 + $0x3c] sm:$0xf]
      %v238 = vunpack.c.l.b16 %v206
      %v239 = vunpack.c.l.b16 %v207
      %v240 = vunpack.c.l.b16 %v208
      %v241 = vunpack.c.l.b16 %v209
      %v242 = vunpack.c.l.b16 %v210
      %v243 = vunpack.c.l.b16 %v211
      %v244 = vunpack.c.l.b16 %v212
      %v245 = vunpack.c.l.b16 %v213
      %v246 = vunpack.c.l.b16 %v214
      %v247 = vunpack.c.l.b16 %v215
      %v248 = vunpack.c.l.b16 %v216
      %v249 = vunpack.c.l.b16 %v217
      %v250 = vunpack.c.l.b16 %v218
      %v251 = vunpack.c.l.b16 %v219
      %v252 = vunpack.c.l.b16 %v220
      %v253 = vunpack.c.l.b16 %v221
      %v254 = vpack.c.b16 %v239, %v238
      %v255 = vpack.c.b16 %v241, %v240
      %v256 = vpack.c.b16 %v243, %v242
      %v257 = vpack.c.b16 %v245, %v244
      %v258 = vpack.c.b16 %v247, %v246
      %v259 = vpack.c.b16 %v249, %v248
      %v260 = vpack.c.b16 %v251, %v250
      %v261 = vpack.c.b16 %v253, %v252
      %270 = vmatprep.subr.bf16.mxu0 0
      %271 = vmatpush1.bf16.msra.mxu0 %v254
      %272 = vmatprep.subr.bf16.mxu0 0
      %273 = vmatpush1.bf16.msra.mxu0 %v255
      %274 = vmatprep.subr.bf16.mxu0 0
      %275 = vmatpush1.bf16.msra.mxu0 %v256
      %276 = vmatprep.subr.bf16.mxu0 0
      %277 = vmatpush1.bf16.msra.mxu0 %v257
      %278 = vmatprep.subr.bf16.mxu0 0
      %279 = vmatpush1.bf16.msra.mxu0 %v258
      %280 = vmatprep.subr.bf16.mxu0 0
      %281 = vmatpush1.bf16.msra.mxu0 %v259
      %282 = vmatprep.subr.bf16.mxu0 0
      %283 = vmatpush1.bf16.msra.mxu0 %v260
      %284 = vmatprep.subr.bf16.mxu0 0
      %285 = vmatpush1.bf16.msra.mxu0 %v261
      %286 = vmatprep.subr.bf16.mxu0 0
      %287 = vmatpush1.bf16.msra.mxu0 0
      %288 = vmatprep.subr.bf16.mxu0 0
      %289 = vmatpush1.bf16.msra.mxu0 0
      %290 = vmatprep.subr.bf16.mxu0 0
      %291 = vmatpush1.bf16.msra.mxu0 0
      %292 = vmatprep.subr.bf16.mxu0 0
      %293 = vmatpush1.bf16.msra.mxu0 0
      %294 = vmatprep.subr.bf16.mxu0 0
      %295 = vmatpush1.bf16.msra.mxu0 0
      %296 = vmatprep.subr.bf16.mxu0 0
      %297 = vmatpush1.bf16.msra.mxu0 0
      %298 = vmatprep.subr.bf16.mxu0 0
      %299 = vmatpush1.bf16.msra.mxu0 0
      %300 = vmatprep.subr.bf16.mxu0 0
      %301 = vmatpush1.bf16.msra.mxu0 0
      %302 = vmatprep.mubr.bf16.mxu0 0
      %303 = vmatmul.mubr.bf16.gmra.mrb[0].mxu0 %v205
      %v304 = vpop.f32.mrb[0].mxu0
      %v305 = vadd.f32 0.0, %v304
      %v306 = vpop.f32.mrb[0].mxu0
      %v307 = vpop.f32.mrb[0].mxu0
      %v308 = vpop.f32.mrb[0].mxu0
      %309 = vdwg.mxu0
      %310 = vst [vmem:[%s203] sm:$0xff] %v305
      %p311 = scmp.lt.s32.totalorder %s24, 4
      %s312 = scalar_select %p311, %s24, 4
      %p313 = scmp.lt.s32.totalorder %s25, 0
      %s314 = scalar_select %p313, %s25, 0
      %s315 = sadd.s32 %s314, %s312
      %s316 = smul.addr %s315, 8
      %s317 = scalar_lea.vmem %s3, %s316
      // Predicated region
      $region29: #{conditional_linear.1} parent=27 // pred_check
        %p318 = pneg %p108
      $region30: #{conditional_linear.1} parent=27 // pred_check_branch
        %320 = sbr.rel (%p318) target = $region32
      $region31: #{conditional_linear.1} parent=27 // pred_region
        _
      $region32: #{conditional_linear.1} parent=27 // pred_fallthru
        _
    $region28: #{conditional_linear.1} parent=5 // pred_fallthru
      _
    %p321 = scmp.le.s32.totalorder 2, %s15
    // Predicated region
    $region33: #{conditional_linear.1} parent=5 // pred_check
      %p322 = pneg %p321
    $region34: #{conditional_linear.1} parent=5 // pred_check_branch
      %324 = sbr.rel (%p322) target = $region36
    $region35: #{conditional_linear.1} parent=5 // pred_region
      %s325 = ssub.s32 %s15, 2
      // Predicated region
      $region37: #{conditional_linear.1} parent=35 // pred_check
        %p326 = pneg %p114
      $region38: #{conditional_linear.1} parent=35 // pred_check_branch
        %328 = sbr.rel (%p326) target = $region40
      $region39: #{conditional_linear.1} parent=35 // pred_region
        %p329 = scmp.lt.s32.totalorder %s26, 4
        %s330 = scalar_select %p329, %s26, 4
        %p331 = scmp.lt.s32.totalorder %s27, 0
        %s332 = scalar_select %p331, %s27, 0
        %s333 = sadd.s32 %s332, %s330
        %s334 = smul.addr %s333, 8
        %s335 = scalar_lea.vmem %s3, %s334
      $region40: #{conditional_linear.1} parent=35 // pred_fallthru
        _
    $region36: #{conditional_linear.1} parent=5 // pred_fallthru
      _
  $region6: #{conditional_linear.1} parent=0 // loop_footer
    %s19 = sadd.s32 1, %s15
  $region7: #{conditional_linear.1} parent=0 // loop_footer_branch
    %14 = sbr.rel target = $region3
  $region8: #{conditional_linear.1} parent=0 // loop_exit
    _

</llo_original>
